<compile_context>
chip_gen: v7x
topology: tpu7x:2x2x1
jax: 0.10.0
libtpu: 0.0.40
codegen_flags: <defaults>
</compile_context>

<pallas_src>
import jax
import jax.numpy as jnp
from jax.experimental import pallas as pl
from jax.experimental.pallas import tpu as pltpu


def _hardsigmoid_decompose_kernel(x_ref, o_ref):
    x = x_ref[...]
    # ReLU6: clamp to [0, 6], then scale by 1/6 (exact torch decomposed math).
    a = jnp.clip(x, 0.0, 6.0)
    o_ref[...] = ((1.0 / 6.0) * a).astype(o_ref.dtype)


def hardsigmoid_decompose(x, *, max_block_bytes=2 * 1024 * 1024):
    """Applies relu6(x) * (1/6) elementwise. x: any shape, float dtype."""
    orig_shape = x.shape
    dtype = x.dtype
    itemsize = jnp.dtype(dtype).itemsize
    n = x.size

    # --- Choose a lane-dense last dimension (big multiple of 128 preferred). ---
    lane = None
    for cand in (1024, 512, 256, 128):
        if n % cand == 0:
            lane = cand
            break

    x_flat = jnp.reshape(x, (-1,))
    padded = False
    if lane is None:
        # Rare non-divisible case: pad only to the next 128 multiple.
        lane = 128
        n_eff = pl.cdiv(n, lane) * lane
        x_flat = jnp.pad(x_flat, (0, n_eff - n))
        padded = True
    else:
        n_eff = n

    rows = n_eff // lane
    x2d = jnp.reshape(x_flat, (rows, lane))

    # --- Row tile sized for ~max_block_bytes, aligned to the dtype's sublane. ---
    # Sublane packing: f32 -> 8 rows/vreg, bf16/f16 -> 16, 8-bit -> 32.
    sublane = {4: 8, 2: 16, 1: 32}.get(itemsize, 8)
    target_rows = max(1, max_block_bytes // (lane * itemsize))
    if rows <= target_rows:
        # One block covering the whole array (block_shape == array dims is
        # always legal, no (8,128) divisibility requirement).
        tile_rows = rows
    else:
        tile_rows = max(sublane, (target_rows // sublane) * sublane)

    grid = (pl.cdiv(rows, tile_rows),)

    cost = pl.CostEstimate(
        flops=2 * n,                      # clamp + scale
        transcendentals=0,
        bytes_accessed=2 * n * itemsize,  # read + write, bandwidth-bound
    )

    out2d = pl.pallas_call(
        _hardsigmoid_decompose_kernel,
        out_shape=jax.ShapeDtypeStruct((rows, lane), dtype),
        grid_spec=pltpu.PrefetchScalarGridSpec(
            num_scalar_prefetch=0,
            grid=grid,
            in_specs=[pl.BlockSpec((tile_rows, lane), lambda i: (i, 0))],
            out_specs=pl.BlockSpec((tile_rows, lane), lambda i: (i, 0)),
        ),
        compiler_params=pltpu.CompilerParams(
            dimension_semantics=("parallel",),
        ),
        cost_estimate=cost,
    )(x2d)

    out_flat = jnp.reshape(out2d, (-1,))
    if padded:
        out_flat = out_flat[:n]
    return jnp.reshape(out_flat, orig_shape)


if __name__ == "__main__":
    key = jax.random.PRNGKey(0)
    # NCHW input, values spanning the interesting range of relu6.
    x = jax.random.uniform(key, (2, 4, 16, 16), dtype=jnp.float32,
                           minval=-3.0, maxval=9.0)

    out = hardsigmoid_decompose(x)
    out = jax.block_until_ready(out)

    # Reference check (pure JAX) of the exact torch semantics.
    ref = (1.0 / 6.0) * jnp.clip(x, 0.0, 6.0)
    assert out.shape == x.shape and out.dtype == x.dtype
    assert jnp.max(jnp.abs(out - ref)) < 1e-6

    # Also exercise a non-128-divisible shape (pad path) for robustness.
    x_odd = jax.random.uniform(jax.random.PRNGKey(1), (3, 5, 7),
                               dtype=jnp.float32, minval=-3.0, maxval=9.0)
    out_odd = jax.block_until_ready(hardsigmoid_decompose(x_odd))
    ref_odd = (1.0 / 6.0) * jnp.clip(x_odd, 0.0, 6.0)
    assert out_odd.shape == x_odd.shape
    assert jnp.max(jnp.abs(out_odd - ref_odd)) < 1e-6

    print("KERNEL_OK")
</pallas_src>

<mosaic_0001>
module attributes {stable_mosaic.version = 11 : i64} {
  func.func @_hardsigmoid_decompose_kernel(%arg0: i32, %arg1: memref<2x1024xf32, #tpu.memory_space<vmem>>, %arg2: memref<2x1024xf32, #tpu.memory_space<vmem>>) attributes {dimension_semantics = [#tpu.dimension_semantics<parallel>], iteration_bounds = array<i64: 1>, scalar_prefetch = 0 : i64, scratch_operands = 0 : i64, tpu.core_type = #tpu.core_type<tc>, window_params = [{transform_indices = @transform_0, window_bounds = array<i64: 2, 1024>}, {transform_indices = @transform_1, window_bounds = array<i64: 2, 1024>}]} {
    %c0 = arith.constant 0 : index
    %c0_0 = arith.constant 0 : index
    %0 = vector.load %arg1[%c0, %c0_0] : memref<2x1024xf32, #tpu.memory_space<vmem>>, vector<2x1024xf32>
    %cst = arith.constant 0.000000e+00 : f32
    %cst_1 = arith.constant 6.000000e+00 : f32
    %1 = vector.broadcast %cst : f32 to vector<2x1024xf32>
    %2 = arith.maximumf %1, %0 : vector<2x1024xf32>
    %3 = vector.broadcast %cst_1 : f32 to vector<2x1024xf32>
    %4 = arith.minimumf %3, %2 : vector<2x1024xf32>
    %cst_2 = arith.constant 0.166666672 : f32
    %5 = vector.broadcast %cst_2 : f32 to vector<2x1024xf32>
    %6 = arith.mulf %5, %4 : vector<2x1024xf32>
    %c0_3 = arith.constant 0 : index
    %c0_4 = arith.constant 0 : index
    %7 = vector.load %arg2[%c0_3, %c0_4] : memref<2x1024xf32, #tpu.memory_space<vmem>>, vector<2x1024xf32>
    tpu.vector_store %arg2[%c0_3, %c0_4], %6 {strides = array<i32>} : memref<2x1024xf32, #tpu.memory_space<vmem>>, vector<2x1024xf32>,
    return
  }
  func.func @transform_0(%arg0: i32) -> (i32, i32) {
    %c0_i32 = arith.constant 0 : i32
    %c0_i32_0 = arith.constant 0 : i32
    return %arg0, %c0_i32 : i32, i32
  }
  func.func @transform_1(%arg0: i32) -> (i32, i32) {
    %c0_i32 = arith.constant 0 : i32
    %c0_i32_0 = arith.constant 0 : i32
    return %arg0, %c0_i32 : i32, i32
  }
}

</mosaic_0001>

<llo_original>
// kernel: tpu_custom_call.1
$region0: #{tpu_custom_call.1}
  #allocation0 [shape = 'u32[]', space=smem, size = 0x4, offset = 0x4, fixed_abs, tag = 'smem constant byte address 0x4 - core index']
  #allocation1 [shape = 'u32[144,128]{1,0:T(1,128)}', space=vmem, size = 0x12000, scoped, tag = 'internal scratch']
  %s0 = inlined_call_operand.hbm [shape: f32[2,1024], index: 0, kind: input, shape index: {}]
  %s1 = inlined_call_operand.hbm [shape: f32[2,1024], index: 1, kind: output, shape index: {}]
  %s2 = sld [smem:[#allocation0]]
  $region18: #{tpu_custom_call.1} parent=0
    _
  %s4 = ssub.s32 1, %s2
  %s5 = scalar_select 0, %s4, %s2
  $region1: #{tpu_custom_call.1} parent=0
    #allocation2 [shape = 'u8[8192]{0}', space=vmem, size = 0x2000, scoped, tag = 'input window, operand 0, single buffered']
    #allocation3 [shape = 's32[1]{0}', space=sflag, size = 0x4, scoped, tag = 'scoped memory for tpu_custom_call.1']
    #allocation4 [shape = 's32[1]{0}', space=sflag, size = 0x4, scoped, tag = 'scoped memory for tpu_custom_call.1']
    #allocation5 [shape = 'u8[8192]{0}', space=vmem, size = 0x2000, scoped, tag = 'output window, operand 0, single buffered']
    %6 = vsyncpa [#allocation3], 0
    %7 = vsyncpa [#allocation4], 0
    // Predicated region
    $region2: #{tpu_custom_call.1} parent=1 // pred_check
      _
    $region3: #{tpu_custom_call.1} parent=1 // pred_check_branch
      %9 = sbr.rel (0) target = $region5
    $region4: #{tpu_custom_call.1} parent=1 // pred_region
      %s11 = ssub.s32 256, 256
      %12 = vsyncadd [#allocation3], %s11
      %s14 = sshll.u32 [#allocation2], 4
      %s15 = int_to_ptr.vmem [resolvable:$true] %s14
      %17 = dma.hbm_to_vmem [thread:$0]  %s0, 256, %s15, [#allocation3]
    $region5: #{tpu_custom_call.1} parent=1 // pred_fallthru
      _
    // Predicated region
    $region6: #{tpu_custom_call.1} parent=1 // pred_check
      _
    $region7: #{tpu_custom_call.1} parent=1 // pred_check_branch
      %19 = sbr.rel (0) target = $region9
    $region8: #{tpu_custom_call.1} parent=1 // pred_region
      %20 = dma.done [#allocation3], 256
    $region9: #{tpu_custom_call.1} parent=1 // pred_fallthru
      _
    %v21 = vld [vmem:[#allocation2] sm:$0xff]
    %v22 = vld [vmem:[#allocation2 + $0x8] sm:$0xff]
    %v23 = vmax.f32 %v21, 0.0
    %v24 = vmax.f32 %v22, 0.0
    %v25 = vmin.f32 %v23, 6.0
    %v26 = vmin.f32 %v24, 6.0
    %v27 = vmul.f32 %v25, 0.16666667
    %v28 = vmul.f32 %v26, 0.16666667
    %29 = vst [vmem:[#allocation5] sm:$0xff] %v27
    %30 = vst [vmem:[#allocation5 + $0x8] sm:$0xff] %v28
    // Predicated region
    $region10: #{tpu_custom_call.1} parent=1 // pred_check
      _
    $region11: #{tpu_custom_call.1} parent=1 // pred_check_branch
      %32 = sbr.rel (0) target = $region13
    $region12: #{tpu_custom_call.1} parent=1 // pred_region
      %s34 = ssub.s32 256, 256
      %35 = vsyncadd [#allocation4], %s34
      %s37 = sshll.u32 [#allocation5], 4
      %s38 = int_to_ptr.vmem [resolvable:$true] %s37
      %40 = dma.vmem_to_hbm [thread:$0]  %s38, 256, %s1, [#allocation4]
    $region13: #{tpu_custom_call.1} parent=1 // pred_fallthru
      _
    // Predicated region
    $region14: #{tpu_custom_call.1} parent=1 // pred_check
      _
    $region15: #{tpu_custom_call.1} parent=1 // pred_check_branch
      %42 = sbr.rel (0) target = $region17
    $region16: #{tpu_custom_call.1} parent=1 // pred_region
      %43 = dma.done [#allocation4], 256
    $region17: #{tpu_custom_call.1} parent=1 // pred_fallthru
      _
    %44 = vsyncpa [#allocation3], 1
    %45 = vsyncpa [#allocation4], 1

</llo_original>
